<compile_context>
chip_gen: v7x
topology: tpu7x:2x2x1
jax: 0.10.0
libtpu: 0.0.40
codegen_flags: <defaults>
</compile_context>

<pallas_src>
import functools

import jax
import jax.numpy as jnp
from jax import lax
from jax.experimental import pallas as pl
from jax.experimental.pallas import tpu as pltpu


def _mha_kernel(xq_ref, x_ref, wq_ref, wk_ref, wv_ref,
                bq_ref, bk_ref, bv_ref, wp_ref, bp_ref,
                o_ref, acc_ref, *, scale):
    h = pl.program_id(2)

    # Seed the (TQ, C) f32 accumulator with the output-projection bias once
    # per (batch, q-tile); per-head contributions are summed into it.
    @pl.when(h == 0)
    def _():
        acc_ref[...] = jnp.broadcast_to(bp_ref[...], acc_ref.shape)

    xq = xq_ref[0]             # (TQ, C)  bf16  (query rows)
    xf = x_ref[0]              # (N,  C)  bf16  (full sequence, for K/V)
    wq = wq_ref[0]             # (C, hd)  bf16
    wk = wk_ref[0]
    wv = wv_ref[0]
    wp = wp_ref[0]             # (hd, C)  bf16

    # Per-head projections: bf16 MXU inputs, f32 accumulation, f32 bias add.
    q = jnp.dot(xq, wq, preferred_element_type=jnp.float32) + bq_ref[0]   # (TQ, hd)
    k = jnp.dot(xf, wk, preferred_element_type=jnp.float32) + bk_ref[0]   # (N,  hd)
    v = jnp.dot(xf, wv, preferred_element_type=jnp.float32) + bv_ref[0]   # (N,  hd)

    # Fold softmax scale into q (cheaper than scaling the (TQ, N) logits).
    q = q * scale

    # Logits: contract over head_dim of BOTH operands — no K transpose.
    s = lax.dot_general(q.astype(jnp.bfloat16), k.astype(jnp.bfloat16),
                        (((1,), (1,)), ((), ())),
                        preferred_element_type=jnp.float32)               # (TQ, N)

    # Numerically-stable softmax (f32).  Normalization is deferred to the
    # (TQ, hd) attention output instead of the (TQ, N) probabilities.
    s = s - jnp.max(s, axis=-1, keepdims=True)
    p = jnp.exp(s)
    l = jnp.sum(p, axis=-1, keepdims=True)                                # (TQ, 1)

    o_h = jnp.dot(p.astype(jnp.bfloat16), v.astype(jnp.bfloat16),
                  preferred_element_type=jnp.float32)                     # (TQ, hd)
    o_h = o_h * pl.reciprocal(l, approx=True)

    # Fused head-merge + output projection: accumulate this head's slice of
    # the projection directly (no concat of per-head outputs).
    acc_ref[...] += jnp.dot(o_h.astype(jnp.bfloat16), wp,
                            preferred_element_type=jnp.float32)           # (TQ, C)

    # TODO(synk): attn_drop / proj_drop are identity in eval mode; no dropout RNG here.

    @pl.when(h == pl.num_programs(2) - 1)
    def _():
        o_ref[0] = acc_ref[...].astype(o_ref.dtype)


def multi_head_attention(x, wqkv, bqkv, wproj, bproj, *, num_heads):
    """TransUNet MultiHeadAttention forward.  x: (B, N, C) -> (B, N, C)."""
    B, N, C = x.shape
    head_dim = C // num_heads
    assert head_dim * num_heads == C
    scale = head_dim ** -0.5

    # Query-tile size: 128-row tiles when they divide N (extra parallel grid
    # work for v7x megacore at small batch); otherwise the full sequence.
    TQ = 128 if (N > 128 and N % 128 == 0) else N
    NQ = N // TQ

    # Head-major weight layout, prepared once outside the kernel.
    wq = wqkv[:, 0 * C:1 * C].reshape(C, num_heads, head_dim).transpose(1, 0, 2)
    wk = wqkv[:, 1 * C:2 * C].reshape(C, num_heads, head_dim).transpose(1, 0, 2)
    wv = wqkv[:, 2 * C:3 * C].reshape(C, num_heads, head_dim).transpose(1, 0, 2)
    bq = bqkv[0 * C:1 * C].reshape(num_heads, 1, head_dim).astype(jnp.float32)
    bk = bqkv[1 * C:2 * C].reshape(num_heads, 1, head_dim).astype(jnp.float32)
    bv = bqkv[2 * C:3 * C].reshape(num_heads, 1, head_dim).astype(jnp.float32)
    wp = wproj.reshape(num_heads, head_dim, C)
    bp = bproj.reshape(1, C).astype(jnp.float32)

    # bf16 MXU inputs (f32 accumulation inside the kernel); biases stay f32.
    xb = x.astype(jnp.bfloat16)
    wq = wq.astype(jnp.bfloat16)
    wk = wk.astype(jnp.bfloat16)
    wv = wv.astype(jnp.bfloat16)
    wp = wp.astype(jnp.bfloat16)

    kernel = functools.partial(_mha_kernel, scale=scale)

    def head_spec(shape):
        return pl.BlockSpec(shape, lambda b, qi, h: (h, 0, 0))

    return pl.pallas_call(
        kernel,
        out_shape=jax.ShapeDtypeStruct((B, N, C), x.dtype),
        grid_spec=pltpu.PrefetchScalarGridSpec(
            num_scalar_prefetch=0,
            grid=(B, NQ, num_heads),
            in_specs=[
                pl.BlockSpec((1, TQ, C), lambda b, qi, h: (b, qi, 0)),   # x (query tile)
                pl.BlockSpec((1, N, C), lambda b, qi, h: (b, 0, 0)),     # x (full, for K/V)
                head_spec((1, C, head_dim)),                              # wq (per head)
                head_spec((1, C, head_dim)),                              # wk
                head_spec((1, C, head_dim)),                              # wv
                head_spec((1, 1, head_dim)),                              # bq
                head_spec((1, 1, head_dim)),                              # bk
                head_spec((1, 1, head_dim)),                              # bv
                head_spec((1, head_dim, C)),                              # wproj (per head)
                pl.BlockSpec((1, C), lambda b, qi, h: (0, 0)),            # bproj
            ],
            out_specs=pl.BlockSpec((1, TQ, C), lambda b, qi, h: (b, qi, 0)),
            scratch_shapes=[pltpu.VMEM((TQ, C), jnp.float32)],
        ),
        compiler_params=pltpu.CompilerParams(
            dimension_semantics=("parallel", "parallel", "arbitrary"),
            vmem_limit_bytes=32 * 1024 * 1024,
        ),
    )(xb, xb, wq, wk, wv, bq, bk, bv, wp, bp)


def _reference(x, wqkv, bqkv, wproj, bproj, num_heads):
    """Plain-JAX reference mirroring the PyTorch forward (eval mode)."""
    B, N, C = x.shape
    hd = C // num_heads
    qkv = x @ wqkv + bqkv                                   # (B, N, 3C)
    qkv = qkv.reshape(B, N, 3, num_heads, hd).transpose(2, 0, 3, 1, 4)
    q, k, v = qkv[0], qkv[1], qkv[2]                        # (B, H, N, hd)
    attn = jnp.einsum("bhqd,bhkd->bhqk", q, k) * hd ** -0.5
    attn = jax.nn.softmax(attn, axis=-1)
    out = jnp.einsum("bhqk,bhkd->bhqd", attn, v)            # (B, H, N, hd)
    out = out.transpose(0, 2, 1, 3).reshape(B, N, C)
    return out @ wproj + bproj


if __name__ == "__main__":
    B, N, C = 2, 8, 32
    num_heads = 4

    key = jax.random.PRNGKey(0)
    k_x, k_wq, k_bq, k_wp, k_bp = jax.random.split(key, 5)

    x = jax.random.normal(k_x, (B, N, C), dtype=jnp.float32)
    # deterministic synthetic parameters (nn.Linear shapes, stored (in, out))
    wqkv = jax.random.normal(k_wq, (C, 3 * C), dtype=jnp.float32) * 0.05
    bqkv = jax.random.normal(k_bq, (3 * C,), dtype=jnp.float32) * 0.05
    wproj = jax.random.normal(k_wp, (C, C), dtype=jnp.float32) * 0.05
    bproj = jax.random.normal(k_bp, (C,), dtype=jnp.float32) * 0.05

    out = multi_head_attention(x, wqkv, bqkv, wproj, bproj,
                               num_heads=num_heads)
    out = jax.block_until_ready(out)

    ref = _reference(x, wqkv, bqkv, wproj, bproj, num_heads)
    assert out.shape == (B, N, C)
    # bf16 matmul inputs with f32 accumulation -> looser tolerance than f32.
    assert jnp.allclose(out, ref, atol=2e-2, rtol=2e-2), \
        float(jnp.max(jnp.abs(out - ref)))

    print("KERNEL_OK")
</pallas_src>

<mosaic_0001>
module attributes {stable_mosaic.version = 11 : i64} {
  func.func @_mha_kernel(%arg0: i32, %arg1: i32, %arg2: i32, %arg3: memref<1x8x32xbf16, #tpu.memory_space<vmem>>, %arg4: memref<1x8x32xbf16, #tpu.memory_space<vmem>>, %arg5: memref<1x32x8xbf16, #tpu.memory_space<vmem>>, %arg6: memref<1x32x8xbf16, #tpu.memory_space<vmem>>, %arg7: memref<1x32x8xbf16, #tpu.memory_space<vmem>>, %arg8: memref<1x1x8xf32, #tpu.memory_space<vmem>>, %arg9: memref<1x1x8xf32, #tpu.memory_space<vmem>>, %arg10: memref<1x1x8xf32, #tpu.memory_space<vmem>>, %arg11: memref<1x8x32xbf16, #tpu.memory_space<vmem>>, %arg12: memref<1x32xf32, #tpu.memory_space<vmem>>, %arg13: memref<1x8x32xf32, #tpu.memory_space<vmem>>, %arg14: memref<8x32xf32, #tpu.memory_space<vmem>>) attributes {dimension_semantics = [#tpu.dimension_semantics<parallel>, #tpu.dimension_semantics<parallel>, #tpu.dimension_semantics<arbitrary>], iteration_bounds = array<i64: 2, 1, 4>, scalar_prefetch = 0 : i64, scratch_operands = 1 : i64, tpu.core_type = #tpu.core_type<tc>, window_params = [{transform_indices = @transform_0, window_bounds = array<i64: 1, 8, 32>}, {transform_indices = @transform_1, window_bounds = array<i64: 1, 8, 32>}, {transform_indices = @transform_2, window_bounds = array<i64: 1, 32, 8>}, {transform_indices = @transform_3, window_bounds = array<i64: 1, 32, 8>}, {transform_indices = @transform_4, window_bounds = array<i64: 1, 32, 8>}, {transform_indices = @transform_5, window_bounds = array<i64: 1, 1, 8>}, {transform_indices = @transform_6, window_bounds = array<i64: 1, 1, 8>}, {transform_indices = @transform_7, window_bounds = array<i64: 1, 1, 8>}, {transform_indices = @transform_8, window_bounds = array<i64: 1, 8, 32>}, {pipeline_mode = #tpu.pipeline_mode<synchronous>, transform_indices = @transform_9, window_bounds = array<i64: 1, 32>}, {transform_indices = @transform_10, window_bounds = array<i64: 1, 8, 32>}]} {
    %c0_i32 = arith.constant 0 : i32
    %0 = arith.cmpi eq, %arg2, %c0_i32 : i32
    %1 = arith.extui %0 : i1 to i32
    %c0_i32_0 = arith.constant 0 : i32
    %2 = arith.cmpi ne, %1, %c0_i32_0 : i32
    scf.if %2 {
      %c0_40 = arith.constant 0 : index
      %c0_41 = arith.constant 0 : index
      %56 = vector.load %arg12[%c0_40, %c0_41] : memref<1x32xf32, #tpu.memory_space<vmem>>, vector<1x32xf32>
      %57 = vector.shape_cast %56 : vector<1x32xf32> to vector<1x32xf32>
      %58 = vector.broadcast %57 : vector<1x32xf32> to vector<8x32xf32>
      %c0_42 = arith.constant 0 : index
      %c0_43 = arith.constant 0 : index
      %59 = vector.load %arg14[%c0_42, %c0_43] : memref<8x32xf32, #tpu.memory_space<vmem>>, vector<8x32xf32>
      tpu.vector_store %arg14[%c0_42, %c0_43], %58 {strides = array<i32>} : memref<8x32xf32, #tpu.memory_space<vmem>>, vector<8x32xf32>,
    } else {
    }
    %c0 = arith.constant 0 : index
    %c0_1 = arith.constant 0 : index
    %c0_2 = arith.constant 0 : index
    %3 = vector.load %arg3[%c0, %c0_1, %c0_2] : memref<1x8x32xbf16, #tpu.memory_space<vmem>>, vector<1x8x32xbf16>
    %4 = vector.shape_cast %3 : vector<1x8x32xbf16> to vector<8x32xbf16>
    %c0_3 = arith.constant 0 : index
    %c0_4 = arith.constant 0 : index
    %c0_5 = arith.constant 0 : index
    %5 = vector.load %arg4[%c0_3, %c0_4, %c0_5] : memref<1x8x32xbf16, #tpu.memory_space<vmem>>, vector<1x8x32xbf16>
    %6 = vector.shape_cast %5 : vector<1x8x32xbf16> to vector<8x32xbf16>
    %c0_6 = arith.constant 0 : index
    %c0_7 = arith.constant 0 : index
    %c0_8 = arith.constant 0 : index
    %7 = vector.load %arg5[%c0_6, %c0_7, %c0_8] : memref<1x32x8xbf16, #tpu.memory_space<vmem>>, vector<1x32x8xbf16>
    %8 = vector.shape_cast %7 : vector<1x32x8xbf16> to vector<32x8xbf16>
    %c0_9 = arith.constant 0 : index
    %c0_10 = arith.constant 0 : index
    %c0_11 = arith.constant 0 : index
    %9 = vector.load %arg6[%c0_9, %c0_10, %c0_11] : memref<1x32x8xbf16, #tpu.memory_space<vmem>>, vector<1x32x8xbf16>
    %10 = vector.shape_cast %9 : vector<1x32x8xbf16> to vector<32x8xbf16>
    %c0_12 = arith.constant 0 : index
    %c0_13 = arith.constant 0 : index
    %c0_14 = arith.constant 0 : index
    %11 = vector.load %arg7[%c0_12, %c0_13, %c0_14] : memref<1x32x8xbf16, #tpu.memory_space<vmem>>, vector<1x32x8xbf16>
    %12 = vector.shape_cast %11 : vector<1x32x8xbf16> to vector<32x8xbf16>
    %c0_15 = arith.constant 0 : index
    %c0_16 = arith.constant 0 : index
    %c0_17 = arith.constant 0 : index
    %13 = vector.load %arg11[%c0_15, %c0_16, %c0_17] : memref<1x8x32xbf16, #tpu.memory_space<vmem>>, vector<1x8x32xbf16>
    %14 = vector.shape_cast %13 : vector<1x8x32xbf16> to vector<8x32xbf16>
    %cst = arith.constant dense<0.000000e+00> : vector<8x8xf32>
    %15 = tpu.matmul %4, %8, %cst {dimension_numbers = #tpu.dot_dimension_numbers<[1], [0], [0], [1], [0, 0, 1, 1], [], []>} : vector<8x32xbf16>, vector<32x8xbf16>, vector<8x8xf32> -> vector<8x8xf32>
    %c0_18 = arith.constant 0 : index
    %c0_19 = arith.constant 0 : index
    %c0_20 = arith.constant 0 : index
    %16 = vector.load %arg8[%c0_18, %c0_19, %c0_20] : memref<1x1x8xf32, #tpu.memory_space<vmem>>, vector<1x1x8xf32>
    %17 = vector.shape_cast %16 : vector<1x1x8xf32> to vector<1x8xf32>
    %18 = vector.broadcast %17 : vector<1x8xf32> to vector<8x8xf32>
    %19 = arith.addf %15, %18 : vector<8x8xf32>
    %cst_21 = arith.constant dense<0.000000e+00> : vector<8x8xf32>
    %20 = tpu.matmul %6, %10, %cst_21 {dimension_numbers = #tpu.dot_dimension_numbers<[1], [0], [0], [1], [0, 0, 1, 1], [], []>} : vector<8x32xbf16>, vector<32x8xbf16>, vector<8x8xf32> -> vector<8x8xf32>
    %c0_22 = arith.constant 0 : index
    %c0_23 = arith.constant 0 : index
    %c0_24 = arith.constant 0 : index
    %21 = vector.load %arg9[%c0_22, %c0_23, %c0_24] : memref<1x1x8xf32, #tpu.memory_space<vmem>>, vector<1x1x8xf32>
    %22 = vector.shape_cast %21 : vector<1x1x8xf32> to vector<1x8xf32>
    %23 = vector.broadcast %22 : vector<1x8xf32> to vector<8x8xf32>
    %24 = arith.addf %20, %23 : vector<8x8xf32>
    %cst_25 = arith.constant dense<0.000000e+00> : vector<8x8xf32>
    %25 = tpu.matmul %6, %12, %cst_25 {dimension_numbers = #tpu.dot_dimension_numbers<[1], [0], [0], [1], [0, 0, 1, 1], [], []>} : vector<8x32xbf16>, vector<32x8xbf16>, vector<8x8xf32> -> vector<8x8xf32>
    %c0_26 = arith.constant 0 : index
    %c0_27 = arith.constant 0 : index
    %c0_28 = arith.constant 0 : index
    %26 = vector.load %arg10[%c0_26, %c0_27, %c0_28] : memref<1x1x8xf32, #tpu.memory_space<vmem>>, vector<1x1x8xf32>
    %27 = vector.shape_cast %26 : vector<1x1x8xf32> to vector<1x8xf32>
    %28 = vector.broadcast %27 : vector<1x8xf32> to vector<8x8xf32>
    %29 = arith.addf %25, %28 : vector<8x8xf32>
    %cst_29 = arith.constant 0.353553385 : f32
    %30 = vector.broadcast %cst_29 : f32 to vector<8x8xf32>
    %31 = arith.mulf %19, %30 : vector<8x8xf32>
    %32 = arith.truncf %31 : vector<8x8xf32> to vector<8x8xbf16>
    %33 = arith.truncf %24 : vector<8x8xf32> to vector<8x8xbf16>
    %cst_30 = arith.constant dense<0.000000e+00> : vector<8x8xf32>
    %34 = tpu.matmul %32, %33, %cst_30 {dimension_numbers = #tpu.dot_dimension_numbers<[1], [1], [0], [0], [0, 0, 1, 0], [], []>} : vector<8x8xbf16>, vector<8x8xbf16>, vector<8x8xf32> -> vector<8x8xf32>
    %cst_31 = arith.constant dense<0xFF800000> : vector<8xf32>
    %35 = vector.multi_reduction <maximumf>, %34, %cst_31 [1] : vector<8x8xf32> to vector<8xf32>
    %36 = vector.shape_cast %35 : vector<8xf32> to vector<8x1xf32>
    %37 = vector.broadcast %36 : vector<8x1xf32> to vector<8x8xf32>
    %38 = arith.subf %34, %37 : vector<8x8xf32>
    %39 = math.exp %38 : vector<8x8xf32>
    %cst_32 = arith.constant dense<0.000000e+00> : vector<8xf32>
    %40 = vector.multi_reduction <add>, %39, %cst_32 [1] : vector<8x8xf32> to vector<8xf32>
    %41 = vector.shape_cast %40 : vector<8xf32> to vector<8x1xf32>
    %42 = arith.truncf %39 : vector<8x8xf32> to vector<8x8xbf16>
    %43 = arith.truncf %29 : vector<8x8xf32> to vector<8x8xbf16>
    %cst_33 = arith.constant dense<0.000000e+00> : vector<8x8xf32>
    %44 = tpu.matmul %42, %43, %cst_33 {dimension_numbers = #tpu.dot_dimension_numbers<[1], [0], [0], [1], [0, 0, 1, 1], [], []>} : vector<8x8xbf16>, vector<8x8xbf16>, vector<8x8xf32> -> vector<8x8xf32>
    %45 = tpu.reciprocal %41 {approx = true} : vector<8x1xf32> -> vector<8x1xf32>
    %46 = vector.broadcast %45 : vector<8x1xf32> to vector<8x8xf32>
    %47 = arith.mulf %44, %46 : vector<8x8xf32>
    %c0_34 = arith.constant 0 : index
    %c0_35 = arith.constant 0 : index
    %48 = vector.load %arg14[%c0_34, %c0_35] : memref<8x32xf32, #tpu.memory_space<vmem>>, vector<8x32xf32>
    %49 = arith.truncf %47 : vector<8x8xf32> to vector<8x8xbf16>
    %cst_36 = arith.constant dense<0.000000e+00> : vector<8x32xf32>
    %50 = tpu.matmul %49, %14, %cst_36 {dimension_numbers = #tpu.dot_dimension_numbers<[1], [0], [0], [1], [0, 0, 1, 1], [], []>} : vector<8x8xbf16>, vector<8x32xbf16>, vector<8x32xf32> -> vector<8x32xf32>
    %51 = arith.addf %48, %50 : vector<8x32xf32>
    %c0_37 = arith.constant 0 : index
    %c0_38 = arith.constant 0 : index
    %52 = vector.load %arg14[%c0_37, %c0_38] : memref<8x32xf32, #tpu.memory_space<vmem>>, vector<8x32xf32>
    tpu.vector_store %arg14[%c0_37, %c0_38], %51 {strides = array<i32>} : memref<8x32xf32, #tpu.memory_space<vmem>>, vector<8x32xf32>,
    %c3_i32 = arith.constant 3 : i32
    %53 = arith.cmpi eq, %arg2, %c3_i32 : i32
    %54 = arith.extui %53 : i1 to i32
    %c0_i32_39 = arith.constant 0 : i32
    %55 = arith.cmpi ne, %54, %c0_i32_39 : i32
    scf.if %55 {
      %c0_40 = arith.constant 0 : index
      %c0_41 = arith.constant 0 : index
      %56 = vector.load %arg14[%c0_40, %c0_41] : memref<8x32xf32, #tpu.memory_space<vmem>>, vector<8x32xf32>
      %c0_42 = arith.constant 0 : index
      %c0_43 = arith.constant 0 : index
      %c0_44 = arith.constant 0 : index
      %57 = vector.load %arg13[%c0_42, %c0_43, %c0_44] : memref<1x8x32xf32, #tpu.memory_space<vmem>>, vector<1x8x32xf32>
      %58 = vector.shape_cast %57 : vector<1x8x32xf32> to vector<8x32xf32>
      %59 = vector.shape_cast %56 : vector<8x32xf32> to vector<1x8x32xf32>
      tpu.vector_store %arg13[%c0_42, %c0_43, %c0_44], %59 {strides = array<i32>} : memref<1x8x32xf32, #tpu.memory_space<vmem>>, vector<1x8x32xf32>,
    } else {
    }
    return
  }
  func.func @transform_0(%arg0: i32, %arg1: i32, %arg2: i32) -> (i32, i32, i32) {
    %c0_i32 = arith.constant 0 : i32
    %c0_i32_0 = arith.constant 0 : i32
    return %arg0, %arg1, %c0_i32 : i32, i32, i32
  }
  func.func @transform_1(%arg0: i32, %arg1: i32, %arg2: i32) -> (i32, i32, i32) {
    %c0_i32 = arith.constant 0 : i32
    %c0_i32_0 = arith.constant 0 : i32
    %c0_i32_1 = arith.constant 0 : i32
    return %arg0, %c0_i32, %c0_i32_0 : i32, i32, i32
  }
  func.func @transform_2(%arg0: i32, %arg1: i32, %arg2: i32) -> (i32, i32, i32) {
    %c0_i32 = arith.constant 0 : i32
    %c0_i32_0 = arith.constant 0 : i32
    %c0_i32_1 = arith.constant 0 : i32
    return %arg2, %c0_i32, %c0_i32_0 : i32, i32, i32
  }
  func.func @transform_3(%arg0: i32, %arg1: i32, %arg2: i32) -> (i32, i32, i32) {
    %c0_i32 = arith.constant 0 : i32
    %c0_i32_0 = arith.constant 0 : i32
    %c0_i32_1 = arith.constant 0 : i32
    return %arg2, %c0_i32, %c0_i32_0 : i32, i32, i32
  }
  func.func @transform_4(%arg0: i32, %arg1: i32, %arg2: i32) -> (i32, i32, i32) {
    %c0_i32 = arith.constant 0 : i32
    %c0_i32_0 = arith.constant 0 : i32
    %c0_i32_1 = arith.constant 0 : i32
    return %arg2, %c0_i32, %c0_i32_0 : i32, i32, i32
  }
  func.func @transform_5(%arg0: i32, %arg1: i32, %arg2: i32) -> (i32, i32, i32) {
    %c0_i32 = arith.constant 0 : i32
    %c0_i32_0 = arith.constant 0 : i32
    %c0_i32_1 = arith.constant 0 : i32
    return %arg2, %c0_i32, %c0_i32_0 : i32, i32, i32
  }
  func.func @transform_6(%arg0: i32, %arg1: i32, %arg2: i32) -> (i32, i32, i32) {
    %c0_i32 = arith.constant 0 : i32
    %c0_i32_0 = arith.constant 0 : i32
    %c0_i32_1 = arith.constant 0 : i32
    return %arg2, %c0_i32, %c0_i32_0 : i32, i32, i32
  }
  func.func @transform_7(%arg0: i32, %arg1: i32, %arg2: i32) -> (i32, i32, i32) {
    %c0_i32 = arith.constant 0 : i32
    %c0_i32_0 = arith.constant 0 : i32
    %c0_i32_1 = arith.constant 0 : i32
    return %arg2, %c0_i32, %c0_i32_0 : i32, i32, i32
  }
  func.func @transform_8(%arg0: i32, %arg1: i32, %arg2: i32) -> (i32, i32, i32) {
    %c0_i32 = arith.constant 0 : i32
    %c0_i32_0 = arith.constant 0 : i32
    %c0_i32_1 = arith.constant 0 : i32
    return %arg2, %c0_i32, %c0_i32_0 : i32, i32, i32
  }
  func.func @transform_9(%arg0: i32, %arg1: i32, %arg2: i32) -> (i32, i32) {
    %c0_i32 = arith.constant 0 : i32
    %c0_i32_0 = arith.constant 0 : i32
    %c0_i32_1 = arith.constant 0 : i32
    return %c0_i32, %c0_i32_0 : i32, i32
  }
  func.func @transform_10(%arg0: i32, %arg1: i32, %arg2: i32) -> (i32, i32, i32) {
    %c0_i32 = arith.constant 0 : i32
    %c0_i32_0 = arith.constant 0 : i32
    return %arg0, %arg1, %c0_i32 : i32, i32, i32
  }
}

</mosaic_0001>

<llo_original>
// kernel: tpu_custom_call.1
$region0: #{tpu_custom_call.1}
  #allocation0 [shape = 'u32[]', space=smem, size = 0x4, offset = 0x4, fixed_abs, tag = 'smem constant byte address 0x4 - core index']
  #allocation1 [shape = 'u32[144,128]{1,0:T(1,128)}', space=vmem, size = 0x12000, scoped, tag = 'internal scratch']
  #allocation2 [shape = 'f32[8,32]{1,0:T(8,128)}', space=vmem, size = 0x1000, scoped, tag = 'scratch operand']
  %s0 = inlined_call_operand.vmem [shape: bf16[2,8,32], index: 0, kind: input, shape index: {}]
  %s1 = inlined_call_operand.vmem [shape: bf16[2,8,32], index: 1, kind: input, shape index: {}]
  %s2 = inlined_call_operand.vmem [shape: bf16[4,32,8], index: 2, kind: input, shape index: {}]
  %s3 = inlined_call_operand.vmem [shape: bf16[4,32,8], index: 3, kind: input, shape index: {}]
  %s4 = inlined_call_operand.vmem [shape: bf16[4,32,8], index: 4, kind: input, shape index: {}]
  %s5 = inlined_call_operand.vmem [shape: f32[4,1,8], index: 5, kind: input, shape index: {}]
  %s6 = inlined_call_operand.vmem [shape: f32[4,1,8], index: 6, kind: input, shape index: {}]
  %s7 = inlined_call_operand.vmem [shape: f32[4,1,8], index: 7, kind: input, shape index: {}]
  %s8 = inlined_call_operand.vmem [shape: bf16[4,8,32], index: 8, kind: input, shape index: {}]
  %s9 = inlined_call_operand.vmem [shape: f32[1,32], index: 9, kind: input, shape index: {}]
  %s10 = inlined_call_operand.hbm [shape: f32[2,8,32], index: 10, kind: output, shape index: {}]
  %s11 = sld [smem:[#allocation0]]
  $region81: #{tpu_custom_call.1} parent=0
    _
  %s13 = ssub.s32 1, %s11
  %s14 = scalar_select 0, %s13, %s11
  $region1: #{tpu_custom_call.1} parent=0
    #allocation3 [shape = 'u8[8192]{0}', space=vmem, size = 0x2000, scoped, tag = 'output window, operand 0']
    #allocation4 [shape = 's32[2]{0}', space=sflag, size = 0x8, scoped, tag = 'scoped memory for tpu_custom_call.1']
    %15 = vsyncpa [#allocation4], 0
    %s16 = scalar_lea.sflag [#allocation4], 1
    %17 = vsyncpa %s16, 0
    loop: start=0, step=1, limit=10
    $region2: #{tpu_custom_call.1} parent=1 // loop_pre_header
      _
    $region3: #{tpu_custom_call.1} parent=1 // loop_header
      %s19 = sphi 0, %s23
      %p20 = scmp.ge.s32.totalorder %s19, 10
      %s26 = sphi 0, %s45
      %s27 = sphi 0, %s41
      %s28 = sphi 0, %s37
      %s29 = sphi 0, %s26
      %s30 = sphi 0, %s27
      %s31 = sphi 0, %s28
      %s32 = sphi 0, %s29
      %s33 = sphi 0, %s30
      %s34 = sphi 0, %s31
      %s50 = sphi 0, %s52
      %s53 = sphi 0, %s50
      %s54 = sphi 0, %s53
      %s70 = sphi 0, %s54
      %s76 = sphi 0, %s78
      %s79 = sphi 0, %s76
      %s80 = sphi 0, %s79
      %s96 = sphi 0, %s80
      %s102 = sphi 0, %s104
      %s105 = sphi 0, %s102
      %s106 = sphi 0, %s105
      %s122 = sphi 0, %s106
      %s128 = sphi 0, %s130
      %s131 = sphi 0, %s128
      %s132 = sphi 0, %s131
      %s148 = sphi 0, %s132
      %s154 = sphi 0, %s156
      %s157 = sphi 0, %s154
      %s158 = sphi 0, %s157
      %s174 = sphi 0, %s158
      %s180 = sphi 0, %s182
      %s183 = sphi 0, %s180
      %s184 = sphi 0, %s183
      %s200 = sphi 0, %s184
      %s206 = sphi 0, %s208
      %s209 = sphi 0, %s206
      %s210 = sphi 0, %s209
      %s226 = sphi 0, %s210
      %s232 = sphi 0, %s234
      %s235 = sphi 0, %s232
      %s236 = sphi 0, %s235
      %s252 = sphi 0, %s236
      %s258 = sphi 0, %s260
      %s261 = sphi 0, %s258
      %s262 = sphi 0, %s261
      %s278 = sphi 0, %s262
      %s282 = sphi 0, %s282
      %s284 = sphi 0, %s282
      %s285 = sphi 0, %s284
      %s299 = sphi 0, %s285
      %s307 = sphi 0, %s309
      %s310 = sphi 0, %s307
      %s311 = sphi 0, %s310
      %s327 = sphi 0, %s311
    $region4: #{tpu_custom_call.1} parent=1 // loop_header_branch
      %22 = sbr.rel (%p20) target = $region8
    $region5: #{tpu_custom_call.1} parent=1 // loop_body
      %s24 = ssub.s32 %s19, 1
      %s25 = ssub.s32 %s19, 2
      %s35 = sadd.s32 1, %s28
      %p36 = scmp.ge.s32.totalorder %s35, 4
      %s37 = scalar_select %p36, 0, %s35
      %s38 = sadd.s32 1, %s27
      %s39 = scalar_select %p36, %s38, %s27
      %p40 = scmp.ge.s32.totalorder %s39, 1
      %s41 = scalar_select %p40, 0, %s39
      %s42 = sadd.s32 1, %s26
      %s43 = scalar_select %p40, %s42, %s26
      %p44 = scmp.ge.s32.totalorder %s43, 2
      %s45 = scalar_select %p44, 0, %s43
      %s46 = ssub.s32 %s26, %s45
      %s47 = ssub.s32 %s27, %s41
      %s48 = sor.u32 %s46, %s47
      %p49 = scmp.eq.s32.totalorder %s48, 0
      %s51 = sadd.s32 %s50, 1
      %s52 = scalar_select %p49, %s50, %s51
      %p55 = pneg %p49
      %p56 = scmp.eq.s32.totalorder %s19, 7
      %p57 = por %p55, %p56
      %p58 = scmp.ne.s32.totalorder %s50, %s53
      %p59 = scmp.eq.s32.totalorder %s19, 0
      %p60 = por %p58, %p59
      %p61 = scmp.ne.s32.totalorder %s50, %s53
      %p62 = scmp.eq.s32.totalorder %s24, 7
      %p63 = por %p61, %p62
      %p64 = scmp.ne.s32.totalorder %s53, %s54
      %p65 = scmp.eq.s32.totalorder %s24, 0
      %p66 = por %p64, %p65
      %p67 = scmp.ne.s32.totalorder %s53, %s54
      %p68 = scmp.eq.s32.totalorder %s25, 7
      %p69 = por %p67, %p68
      %p71 = scmp.ne.s32.totalorder %s54, %s70
      %p72 = scmp.eq.s32.totalorder %s25, 0
      %p73 = por %p71, %p72
      %s74 = ssub.s32 %s26, %s45
      %p75 = scmp.eq.s32.totalorder %s74, 0
      %s77 = sadd.s32 %s76, 1
      %s78 = scalar_select %p75, %s76, %s77
      %p81 = pneg %p75
      %p82 = scmp.eq.s32.totalorder %s19, 7
      %p83 = por %p81, %p82
      %p84 = scmp.ne.s32.totalorder %s76, %s79
      %p85 = scmp.eq.s32.totalorder %s19, 0
      %p86 = por %p84, %p85
      %p87 = scmp.ne.s32.totalorder %s76, %s79
      %p88 = scmp.eq.s32.totalorder %s24, 7
      %p89 = por %p87, %p88
      %p90 = scmp.ne.s32.totalorder %s79, %s80
      %p91 = scmp.eq.s32.totalorder %s24, 0
      %p92 = por %p90, %p91
      %p93 = scmp.ne.s32.totalorder %s79, %s80
      %p94 = scmp.eq.s32.totalorder %s25, 7
      %p95 = por %p93, %p94
      %p97 = scmp.ne.s32.totalorder %s80, %s96
      %p98 = scmp.eq.s32.totalorder %s25, 0
      %p99 = por %p97, %p98
      %s100 = ssub.s32 %s28, %s37
      %p101 = scmp.eq.s32.totalorder %s100, 0
      %s103 = sadd.s32 %s102, 1
      %s104 = scalar_select %p101, %s102, %s103
      %p107 = pneg %p101
      %p108 = scmp.eq.s32.totalorder %s19, 7
      %p109 = por %p107, %p108
      %p110 = scmp.ne.s32.totalorder %s102, %s105
      %p111 = scmp.eq.s32.totalorder %s19, 0
      %p112 = por %p110, %p111
      %p113 = scmp.ne.s32.totalorder %s102, %s105
      %p114 = scmp.eq.s32.totalorder %s24, 7
      %p115 = por %p113, %p114
      %p116 = scmp.ne.s32.totalorder %s105, %s106
      %p117 = scmp.eq.s32.totalorder %s24, 0
      %p118 = por %p116, %p117
      %p119 = scmp.ne.s32.totalorder %s105, %s106
      %p120 = scmp.eq.s32.totalorder %s25, 7
      %p121 = por %p119, %p120
      %p123 = scmp.ne.s32.totalorder %s106, %s122
      %p124 = scmp.eq.s32.totalorder %s25, 0
      %p125 = por %p123, %p124
      %s126 = ssub.s32 %s28, %s37
      %p127 = scmp.eq.s32.totalorder %s126, 0
      %s129 = sadd.s32 %s128, 1
      %s130 = scalar_select %p127, %s128, %s129
      %p133 = pneg %p127
      %p134 = scmp.eq.s32.totalorder %s19, 7
      %p135 = por %p133, %p134
      %p136 = scmp.ne.s32.totalorder %s128, %s131
      %p137 = scmp.eq.s32.totalorder %s19, 0
      %p138 = por %p136, %p137
      %p139 = scmp.ne.s32.totalorder %s128, %s131
      %p140 = scmp.eq.s32.totalorder %s24, 7
      %p141 = por %p139, %p140
      %p142 = scmp.ne.s32.totalorder %s131, %s132
      %p143 = scmp.eq.s32.totalorder %s24, 0
      %p144 = por %p142, %p143
      %p145 = scmp.ne.s32.totalorder %s131, %s132
      %p146 = scmp.eq.s32.totalorder %s25, 7
      %p147 = por %p145, %p146
      %p149 = scmp.ne.s32.totalorder %s132, %s148
      %p150 = scmp.eq.s32.totalorder %s25, 0
      %p151 = por %p149, %p150
      %s152 = ssub.s32 %s28, %s37
      %p153 = scmp.eq.s32.totalorder %s152, 0
      %s155 = sadd.s32 %s154, 1
      %s156 = scalar_select %p153, %s154, %s155
      %p159 = pneg %p153
      %p160 = scmp.eq.s32.totalorder %s19, 7
      %p161 = por %p159, %p160
      %p162 = scmp.ne.s32.totalorder %s154, %s157
      %p163 = scmp.eq.s32.totalorder %s19, 0
      %p164 = por %p162, %p163
      %p165 = scmp.ne.s32.totalorder %s154, %s157
      %p166 = scmp.eq.s32.totalorder %s24, 7
      %p167 = por %p165, %p166
      %p168 = scmp.ne.s32.totalorder %s157, %s158
      %p169 = scmp.eq.s32.totalorder %s24, 0
      %p170 = por %p168, %p169
      %p171 = scmp.ne.s32.totalorder %s157, %s158
      %p172 = scmp.eq.s32.totalorder %s25, 7
      %p173 = por %p171, %p172
      %p175 = scmp.ne.s32.totalorder %s158, %s174
      %p176 = scmp.eq.s32.totalorder %s25, 0
      %p177 = por %p175, %p176
      %s178 = ssub.s32 %s28, %s37
      %p179 = scmp.eq.s32.totalorder %s178, 0
      %s181 = sadd.s32 %s180, 1
      %s182 = scalar_select %p179, %s180, %s181
      %p185 = pneg %p179
      %p186 = scmp.eq.s32.totalorder %s19, 7
      %p187 = por %p185, %p186
      %p188 = scmp.ne.s32.totalorder %s180, %s183
      %p189 = scmp.eq.s32.totalorder %s19, 0
      %p190 = por %p188, %p189
      %p191 = scmp.ne.s32.totalorder %s180, %s183
      %p192 = scmp.eq.s32.totalorder %s24, 7
      %p193 = por %p191, %p192
      %p194 = scmp.ne.s32.totalorder %s183, %s184
      %p195 = scmp.eq.s32.totalorder %s24, 0
      %p196 = por %p194, %p195
      %p197 = scmp.ne.s32.totalorder %s183, %s184
      %p198 = scmp.eq.s32.totalorder %s25, 7
      %p199 = por %p197, %p198
      %p201 = scmp.ne.s32.totalorder %s184, %s200
      %p202 = scmp.eq.s32.totalorder %s25, 0
      %p203 = por %p201, %p202
      %s204 = ssub.s32 %s28, %s37
      %p205 = scmp.eq.s32.totalorder %s204, 0
      %s207 = sadd.s32 %s206, 1
      %s208 = scalar_select %p205, %s206, %s207
      %p211 = pneg %p205
      %p212 = scmp.eq.s32.totalorder %s19, 7
      %p213 = por %p211, %p212
      %p214 = scmp.ne.s32.totalorder %s206, %s209
      %p215 = scmp.eq.s32.totalorder %s19, 0
      %p216 = por %p214, %p215
      %p217 = scmp.ne.s32.totalorder %s206, %s209
      %p218 = scmp.eq.s32.totalorder %s24, 7
      %p219 = por %p217, %p218
      %p220 = scmp.ne.s32.totalorder %s209, %s210
      %p221 = scmp.eq.s32.totalorder %s24, 0
      %p222 = por %p220, %p221
      %p223 = scmp.ne.s32.totalorder %s209, %s210
      %p224 = scmp.eq.s32.totalorder %s25, 7
      %p225 = por %p223, %p224
      %p227 = scmp.ne.s32.totalorder %s210, %s226
      %p228 = scmp.eq.s32.totalorder %s25, 0
      %p229 = por %p227, %p228
      %s230 = ssub.s32 %s28, %s37
      %p231 = scmp.eq.s32.totalorder %s230, 0
      %s233 = sadd.s32 %s232, 1
      %s234 = scalar_select %p231, %s232, %s233
      %p237 = pneg %p231
      %p238 = scmp.eq.s32.totalorder %s19, 7
      %p239 = por %p237, %p238
      %p240 = scmp.ne.s32.totalorder %s232, %s235
      %p241 = scmp.eq.s32.totalorder %s19, 0
      %p242 = por %p240, %p241
      %p243 = scmp.ne.s32.totalorder %s232, %s235
      %p244 = scmp.eq.s32.totalorder %s24, 7
      %p245 = por %p243, %p244
      %p246 = scmp.ne.s32.totalorder %s235, %s236
      %p247 = scmp.eq.s32.totalorder %s24, 0
      %p248 = por %p246, %p247
      %p249 = scmp.ne.s32.totalorder %s235, %s236
      %p250 = scmp.eq.s32.totalorder %s25, 7
      %p251 = por %p249, %p250
      %p253 = scmp.ne.s32.totalorder %s236, %s252
      %p254 = scmp.eq.s32.totalorder %s25, 0
      %p255 = por %p253, %p254
      %s256 = ssub.s32 %s28, %s37
      %p257 = scmp.eq.s32.totalorder %s256, 0
      %s259 = sadd.s32 %s258, 1
      %s260 = scalar_select %p257, %s258, %s259
      %p263 = pneg %p257
      %p264 = scmp.eq.s32.totalorder %s19, 7
      %p265 = por %p263, %p264
      %p266 = scmp.ne.s32.totalorder %s258, %s261
      %p267 = scmp.eq.s32.totalorder %s19, 0
      %p268 = por %p266, %p267
      %p269 = scmp.ne.s32.totalorder %s258, %s261
      %p270 = scmp.eq.s32.totalorder %s24, 7
      %p271 = por %p269, %p270
      %p272 = scmp.ne.s32.totalorder %s261, %s262
      %p273 = scmp.eq.s32.totalorder %s24, 0
      %p274 = por %p272, %p273
      %p275 = scmp.ne.s32.totalorder %s261, %s262
      %p276 = scmp.eq.s32.totalorder %s25, 7
      %p277 = por %p275, %p276
      %p279 = scmp.ne.s32.totalorder %s262, %s278
      %p280 = scmp.eq.s32.totalorder %s25, 0
      %p281 = por %p279, %p280
      %s283 = sadd.s32 %s282, 1
      %p286 = scmp.eq.s32.totalorder %s19, 7
      %p287 = scmp.ne.s32.totalorder %s282, %s284
      %p288 = scmp.eq.s32.totalorder %s19, 0
      %p289 = por %p287, %p288
      %p290 = scmp.ne.s32.totalorder %s282, %s284
      %p291 = scmp.eq.s32.totalorder %s24, 7
      %p292 = por %p290, %p291
      %p293 = scmp.ne.s32.totalorder %s284, %s285
      %p294 = scmp.eq.s32.totalorder %s24, 0
      %p295 = por %p293, %p294
      %p296 = scmp.ne.s32.totalorder %s284, %s285
      %p297 = scmp.eq.s32.totalorder %s25, 7
      %p298 = por %p296, %p297
      %p300 = scmp.ne.s32.totalorder %s285, %s299
      %p301 = scmp.eq.s32.totalorder %s25, 0
      %p302 = por %p300, %p301
      %s303 = ssub.s32 %s26, %s45
      %s304 = ssub.s32 %s27, %s41
      %s305 = sor.u32 %s303, %s304
      %p306 = scmp.eq.s32.totalorder %s305, 0
      %s308 = sadd.s32 %s307, 1
      %s309 = scalar_select %p306, %s307, %s308
      %p312 = pneg %p306
      %p313 = scmp.eq.s32.totalorder %s19, 7
      %p314 = por %p312, %p313
      %p315 = scmp.ne.s32.totalorder %s307, %s310
      %p316 = scmp.eq.s32.totalorder %s19, 0
      %p317 = por %p315, %p316
      %p318 = scmp.ne.s32.totalorder %s307, %s310
      %p319 = scmp.eq.s32.totalorder %s24, 7
      %p320 = por %p318, %p319
      %p321 = scmp.ne.s32.totalorder %s310, %s311
      %p322 = scmp.eq.s32.totalorder %s24, 0
      %p323 = por %p321, %p322
      %p324 = scmp.ne.s32.totalorder %s310, %s311
      %p325 = scmp.eq.s32.totalorder %s25, 7
      %p326 = por %p324, %p325
      %p328 = scmp.ne.s32.totalorder %s311, %s327
      %p329 = scmp.eq.s32.totalorder %s25, 0
      %p330 = por %p328, %p329
      %p331 = scmp.le.s32.totalorder 1, %s19
      %p332 = scmp.lt.s32.totalorder %s19, 9
      %p333 = pnand %p331, %p332
      %p334 = pneg %p333
      // Predicated region
      $region9: #{tpu_custom_call.1} parent=5 // pred_check
        _
      $region10: #{tpu_custom_call.1} parent=5 // pred_check_branch
        %336 = sbr.rel (%p333) target = $region12
      $region11: #{tpu_custom_call.1} parent=5 // pred_region
        %s337 = ssub.s32 %s19, 1
        // Predicated region
        $region13: #{tpu_custom_call.1} parent=11 // pred_check
          %p338 = pneg %p295
        $region14: #{tpu_custom_call.1} parent=11 // pred_check_branch
          %340 = sbr.rel (%p338) target = $region16
        $region15: #{tpu_custom_call.1} parent=11 // pred_region
          _
        $region16: #{tpu_custom_call.1} parent=11 // pred_fallthru
          _
      $region12: #{tpu_custom_call.1} parent=5 // pred_fallthru
        _
      %p341 = scmp.lt.s32.totalorder %s19, 8
      // Predicated region
      $region17: #{tpu_custom_call.1} parent=5 // pred_check
        %p342 = pneg %p341
      $region18: #{tpu_custom_call.1} parent=5 // pred_check_branch
        %344 = sbr.rel (%p342) target = $region20
      $region19: #{tpu_custom_call.1} parent=5 // pred_region
        // Predicated region
        $region21: #{tpu_custom_call.1} parent=19 // pred_check
          %p345 = pneg %p60
        $region22: #{tpu_custom_call.1} parent=19 // pred_check_branch
          %347 = sbr.rel (%p345) target = $region24
        $region23: #{tpu_custom_call.1} parent=19 // pred_region
          %p348 = scmp.lt.s32.totalorder %s26, 1
          %s349 = scalar_select %p348, %s26, 1
          %p350 = scmp.lt.s32.totalorder %s27, 0
          %s351 = scalar_select %p350, %s27, 0
          %s352 = sadd.s32 %s351, %s349
          %s353 = smul.addr %s352, 4
          %s354 = scalar_lea.vmem %s0, %s353
        $region24: #{tpu_custom_call.1} parent=19 // pred_fallthru
          _
        // Predicated region
        $region25: #{tpu_custom_call.1} parent=19 // pred_check
          %p355 = pneg %p86
        $region26: #{tpu_custom_call.1} parent=19 // pred_check_branch
          %357 = sbr.rel (%p355) target = $region28
        $region27: #{tpu_custom_call.1} parent=19 // pred_region
          %p358 = scmp.lt.s32.totalorder %s26, 1
          %s359 = scalar_select %p358, %s26, 1
          %s360 = smul.addr %s359, 4
          %s361 = scalar_lea.vmem %s1, %s360
        $region28: #{tpu_custom_call.1} parent=19 // pred_fallthru
          _
        // Predicated region
        $region29: #{tpu_custom_call.1} parent=19 // pred_check
          %p362 = pneg %p112
        $region30: #{tpu_custom_call.1} parent=19 // pred_check_branch
          %364 = sbr.rel (%p362) target = $region32
        $region31: #{tpu_custom_call.1} parent=19 // pred_region
          %p365 = scmp.lt.s32.totalorder %s28, 3
          %s366 = scalar_select %p365, %s28, 3
          %s367 = smul.addr %s366, 4
          %s368 = smul.addr %s367, 4
          %s369 = scalar_lea.vmem %s2, %s368
        $region32: #{tpu_custom_call.1} parent=19 // pred_fallthru
          _
        // Predicated region
        $region33: #{tpu_custom_call.1} parent=19 // pred_check
          %p370 = pneg %p138
        $region34: #{tpu_custom_call.1} parent=19 // pred_check_branch
          %372 = sbr.rel (%p370) target = $region36
        $region35: #{tpu_custom_call.1} parent=19 // pred_region
          %p373 = scmp.lt.s32.totalorder %s28, 3
          %s374 = scalar_select %p373, %s28, 3
          %s375 = smul.addr %s374, 4
          %s376 = smul.addr %s375, 4
          %s377 = scalar_lea.vmem %s3, %s376
        $region36: #{tpu_custom_call.1} parent=19 // pred_fallthru
          _
        // Predicated region
        $region37: #{tpu_custom_call.1} parent=19 // pred_check
          %p378 = pneg %p164
        $region38: #{tpu_custom_call.1} parent=19 // pred_check_branch
          %380 = sbr.rel (%p378) target = $region40
        $region39: #{tpu_custom_call.1} parent=19 // pred_region
          %p381 = scmp.lt.s32.totalorder %s28, 3
          %s382 = scalar_select %p381, %s28, 3
          %s383 = smul.addr %s382, 4
          %s384 = smul.addr %s383, 4
          %s385 = scalar_lea.vmem %s4, %s384
        $region40: #{tpu_custom_call.1} parent=19 // pred_fallthru
          _
        // Predicated region
        $region41: #{tpu_custom_call.1} parent=19 // pred_check
          %p386 = pneg %p190
        $region42: #{tpu_custom_call.1} parent=19 // pred_check_branch
          %388 = sbr.rel (%p386) target = $region44
        $region43: #{tpu_custom_call.1} parent=19 // pred_region
          %p389 = scmp.lt.s32.totalorder %s28, 3
          %s390 = scalar_select %p389, %s28, 3
          %s391 = scalar_lea.vmem %s5, %s390
        $region44: #{tpu_custom_call.1} parent=19 // pred_fallthru
          _
        // Predicated region
        $region45: #{tpu_custom_call.1} parent=19 // pred_check
          %p392 = pneg %p216
        $region46: #{tpu_custom_call.1} parent=19 // pred_check_branch
          %394 = sbr.rel (%p392) target = $region48
        $region47: #{tpu_custom_call.1} parent=19 // pred_region
          %p395 = scmp.lt.s32.totalorder %s28, 3
          %s396 = scalar_select %p395, %s28, 3
          %s397 = scalar_lea.vmem %s6, %s396
        $region48: #{tpu_custom_call.1} parent=19 // pred_fallthru
          _
        // Predicated region
        $region49: #{tpu_custom_call.1} parent=19 // pred_check
          %p398 = pneg %p242
        $region50: #{tpu_custom_call.1} parent=19 // pred_check_branch
          %400 = sbr.rel (%p398) target = $region52
        $region51: #{tpu_custom_call.1} parent=19 // pred_region
          %p401 = scmp.lt.s32.totalorder %s28, 3
          %s402 = scalar_select %p401, %s28, 3
          %s403 = scalar_lea.vmem %s7, %s402
        $region52: #{tpu_custom_call.1} parent=19 // pred_fallthru
          _
        // Predicated region
        $region53: #{tpu_custom_call.1} parent=19 // pred_check
          %p404 = pneg %p268
        $region54: #{tpu_custom_call.1} parent=19 // pred_check_branch
          %406 = sbr.rel (%p404) target = $region56
        $region55: #{tpu_custom_call.1} parent=19 // pred_region
          %p407 = scmp.lt.s32.totalorder %s28, 3
          %s408 = scalar_select %p407, %s28, 3
          %s409 = smul.addr %s408, 4
          %s410 = scalar_lea.vmem %s8, %s409
        $region56: #{tpu_custom_call.1} parent=19 // pred_fallthru
          _
      $region20: #{tpu_custom_call.1} parent=5 // pred_fallthru
        _
      %p411 = scmp.le.s32.totalorder 1, %s19
      %p412 = scmp.lt.s32.totalorder %s19, 9
      %p413 = pnand %p411, %p412
      %p414 = pneg %p413
      // Predicated region
      $region57: #{tpu_custom_call.1} parent=5 // pred_check
        _
      $region58: #{tpu_custom_call.1} parent=5 // pred_check_branch
        %416 = sbr.rel (%p413) target = $region60
      $region59: #{tpu_custom_call.1} parent=5 // pred_region
        %s417 = ssub.s32 %s19, 1
        %p418 = scmp.lt.s32.totalorder %s29, 1
        %s419 = scalar_select %p418, %s29, 1
        %p420 = scmp.lt.s32.totalorder %s30, 0
        %s421 = scalar_select %p420, %s30, 0
        %s422 = sadd.s32 %s421, %s419
        %s423 = smul.addr %s422, 4
        %s424 = scalar_lea.vmem %s0, %s423
        %p425 = pneg %p66
        %p426 = pneg %p63
        %p427 = scmp.lt.s32.totalorder %s29, 1
        %s428 = scalar_select %p427, %s29, 1
        %s429 = smul.addr %s428, 4
        %s430 = scalar_lea.vmem %s1, %s429
        %p431 = pneg %p92
        %p432 = pneg %p89
        %p433 = scmp.lt.s32.totalorder %s31, 3
        %s434 = scalar_select %p433, %s31, 3
        %s435 = smul.addr %s434, 4
        %s436 = smul.addr %s435, 4
        %s437 = scalar_lea.vmem %s2, %s436
        %p438 = pneg %p118
        %p439 = pneg %p115
        %p440 = scmp.lt.s32.totalorder %s31, 3
        %s441 = scalar_select %p440, %s31, 3
        %s442 = smul.addr %s441, 4
        %s443 = smul.addr %s442, 4
        %s444 = scalar_lea.vmem %s3, %s443
        %p445 = pneg %p144
        %p446 = pneg %p141
        %p447 = scmp.lt.s32.totalorder %s31, 3
        %s448 = scalar_select %p447, %s31, 3
        %s449 = smul.addr %s448, 4
        %s450 = smul.addr %s449, 4
        %s451 = scalar_lea.vmem %s4, %s450
        %p452 = pneg %p170
        %p453 = pneg %p167
        %p454 = scmp.lt.s32.totalorder %s31, 3
        %s455 = scalar_select %p454, %s31, 3
        %s456 = scalar_lea.vmem %s5, %s455
        %p457 = pneg %p196
        %p458 = pneg %p193
        %p459 = scmp.lt.s32.totalorder %s31, 3
        %s460 = scalar_select %p459, %s31, 3
        %s461 = scalar_lea.vmem %s6, %s460
        %p462 = pneg %p222
        %p463 = pneg %p219
        %p464 = scmp.lt.s32.totalorder %s31, 3
        %s465 = scalar_select %p464, %s31, 3
        %s466 = scalar_lea.vmem %s7, %s465
        %p467 = pneg %p248
        %p468 = pneg %p245
        %p469 = scmp.lt.s32.totalorder %s31, 3
        %s470 = scalar_select %p469, %s31, 3
        %s471 = smul.addr %s470, 4
        %s472 = scalar_lea.vmem %s8, %s471
        %p473 = pneg %p274
        %p474 = pneg %p271
        %p475 = pneg %p295
        %p476 = pneg %p292
        %p477 = pneg %p323
        %p478 = pneg %p320
        %s479 = sand.u32 %s310, 1
        %s480 = scalar_lea.sflag [#allocation4], %s479
        %s481 = sand.u32 %s310, 1
        %s482 = smul.addr %s481, 8
        %s483 = scalar_lea.vmem [#allocation3], %s482
        %p484 = scmp.lt.s32.totalorder %s29, 1
        %s485 = scalar_select %p484, %s29, 1
        %p486 = scmp.lt.s32.totalorder %s30, 0
        %s487 = scalar_select %p486, %s30, 0
        %s488 = sadd.s32 %s487, %s485
        %s489 = smul.addr %s488, 4
        %s490 = scalar_lea.vmem %s0, %s489
        %p491 = scmp.lt.s32.totalorder %s29, 1
        %s492 = scalar_select %p491, %s29, 1
        %s493 = smul.addr %s492, 4
        %s494 = scalar_lea.vmem %s1, %s493
        %p495 = scmp.lt.s32.totalorder %s31, 3
        %s496 = scalar_select %p495, %s31, 3
        %s497 = smul.addr %s496, 4
        %s498 = smul.addr %s497, 4
        %s499 = scalar_lea.vmem %s2, %s498
        %p500 = scmp.lt.s32.totalorder %s31, 3
        %s501 = scalar_select %p500, %s31, 3
        %s502 = smul.addr %s501, 4
        %s503 = smul.addr %s502, 4
        %s504 = scalar_lea.vmem %s3, %s503
        %p505 = scmp.lt.s32.totalorder %s31, 3
        %s506 = scalar_select %p505, %s31, 3
        %s507 = smul.addr %s506, 4
        %s508 = smul.addr %s507, 4
        %s509 = scalar_lea.vmem %s4, %s508
        %p510 = scmp.lt.s32.totalorder %s31, 3
        %s511 = scalar_select %p510, %s31, 3
        %s512 = scalar_lea.vmem %s5, %s511
        %p513 = scmp.lt.s32.totalorder %s31, 3
        %s514 = scalar_select %p513, %s31, 3
        %s515 = scalar_lea.vmem %s6, %s514
        %p516 = scmp.lt.s32.totalorder %s31, 3
        %s517 = scalar_select %p516, %s31, 3
        %s518 = scalar_lea.vmem %s7, %s517
        %p519 = scmp.lt.s32.totalorder %s31, 3
        %s520 = scalar_select %p519, %s31, 3
        %s521 = smul.addr %s520, 4
        %s522 = scalar_lea.vmem %s8, %s521
        %p524 = scmp.eq.s32.totalorder %s31, 0
        // Predicated region
        $region61: #{tpu_custom_call.1} parent=59 // pred_check
          %p525 = pneg %p524
        $region62: #{tpu_custom_call.1} parent=59 // pred_check_branch
          %527 = sbr.rel (%p525) target = $region64
        $region63: #{tpu_custom_call.1} parent=59 // pred_region
          %v528 = vld [vmem:[%s9] sm:$0x1]
          %v530 = vlaneseq
          %v531 = vshrl.u32 %v530, 7
          %v532 = vsub.s32 0, %v531
          %v533 = vrot.slane %v528, %v532
          %vm535 = vcmask 261120
          %536 = vst.msk [vmem:[#allocation2] sm:$0xff] %vm535, %v533
        $region64: #{tpu_custom_call.1} parent=59 // pred_fallthru
          _
        %v537 = vld [vmem:[%s490] sm:$0xf]
        %v538 = vld [vmem:[%s494] sm:$0xf]
        %v539 = vld [vmem:[%s499] sm:$0xf]
        %v540 = vld [vmem:[%s499 + $0x4] sm:$0xf]
        %v541 = vld [vmem:[%s499 + $0x8] sm:$0xf]
        %v542 = vld [vmem:[%s499 + $0xc] sm:$0xf]
        %v543 = vld [vmem:[%s504] sm:$0xf]
        %v544 = vld [vmem:[%s504 + $0x4] sm:$0xf]
        %v545 = vld [vmem:[%s504 + $0x8] sm:$0xf]
        %v546 = vld [vmem:[%s504 + $0xc] sm:$0xf]
        %v547 = vld [vmem:[%s509] sm:$0xf]
        %v548 = vld [vmem:[%s509 + $0x4] sm:$0xf]
        %v549 = vld [vmem:[%s509 + $0x8] sm:$0xf]
        %v550 = vld [vmem:[%s509 + $0xc] sm:$0xf]
        %v551 = vld [vmem:[%s522] sm:$0xf]
        %v552 = vld [vmem:[%s512] sm:$0x1]
        %v554 = vlaneseq
        %v555 = vshrl.u32 %v554, 7
        %v556 = vsub.s32 0, %v555
        %v557 = vrot.slane %v552, %v556
        %v563 = vunpack.c.l.b16 %v539
        %v564 = vunpack.c.l.b16 %v540
        %v565 = vunpack.c.l.b16 %v541
        %v566 = vunpack.c.l.b16 %v542
        %v567 = vpack.c.b16 %v564, %v563
        %v568 = vpack.c.b16 %v566, %v565
        %vm571 = vcmask 261120
        %v573 = vsel %vm571, %v537, 0
        %575 = vmatprep.subr.bf16.mxu0 0
        %576 = vmatpush1.bf16.msra.mxu0 %v567
        %577 = vmatprep.subr.bf16.mxu0 0
        %578 = vmatpush1.bf16.msra.mxu0 %v568
        %579 = vmatprep.subr.bf16.mxu0 0
        %580 = vmatpush1.bf16.msra.mxu0 0
        %581 = vmatprep.subr.bf16.mxu0 0
        %582 = vmatpush1.bf16.msra.mxu0 0
        %583 = vmatprep.subr.bf16.mxu0 0
        %584 = vmatpush1.bf16.msra.mxu0 0
        %585 = vmatprep.subr.bf16.mxu0 0
        %586 = vmatpush1.bf16.msra.mxu0 0
        %587 = vmatprep.subr.bf16.mxu0 0
        %588 = vmatpush1.bf16.msra.mxu0 0
        %589 = vmatprep.subr.bf16.mxu0 0
        %590 = vmatpush1.bf16.msra.mxu0 0
        %591 = vmatprep.subr.bf16.mxu0 0
        %592 = vmatpush1.bf16.msra.mxu0 0
        %593 = vmatprep.subr.bf16.mxu0 0
        %594 = vmatpush1.bf16.msra.mxu0 0
        %595 = vmatprep.subr.bf16.mxu0 0
        %596 = vmatpush1.bf16.msra.mxu0 0
        %597 = vmatprep.subr.bf16.mxu0 0
        %598 = vmatpush1.bf16.msra.mxu0 0
        %599 = vmatprep.subr.bf16.mxu0 0
        %600 = vmatpush1.bf16.msra.mxu0 0
        %601 = vmatprep.subr.bf16.mxu0 0
        %602 = vmatpush1.bf16.msra.mxu0 0
        %603 = vmatprep.subr.bf16.mxu0 0
        %604 = vmatpush1.bf16.msra.mxu0 0
        %605 = vmatprep.subr.bf16.mxu0 0
        %606 = vmatpush1.bf16.msra.mxu0 0
        %607 = vmatprep.mubr.bf16.mxu0 0
        %608 = vmatmul.mubr.bf16.gmra.mrb[0].mxu0 %v573
        %v609 = vpop.f32.mrb[0].mxu0
        %v610 = vadd.f32 %v557, %v609
        %v611 = vpop.f32.mrb[0].mxu0
        %v612 = vpop.f32.mrb[0].mxu0
        %v613 = vpop.f32.mrb[0].mxu0
        %614 = vdwg.mxu0
        %v615 = vld [vmem:[%s515] sm:$0x1]
        %v617 = vlaneseq
        %v618 = vshrl.u32 %v617, 7
        %v619 = vsub.s32 0, %v618
        %v620 = vrot.slane %v615, %v619
        %v626 = vunpack.c.l.b16 %v543
        %v627 = vunpack.c.l.b16 %v544
        %v628 = vunpack.c.l.b16 %v545
        %v629 = vunpack.c.l.b16 %v546
        %v630 = vpack.c.b16 %v627, %v626
        %v631 = vpack.c.b16 %v629, %v628
        %v635 = vsel %vm571, %v538, 0
        %637 = vmatprep.subr.bf16.mxu0 0
        %638 = vmatpush1.bf16.msra.mxu0 %v630
        %639 = vmatprep.subr.bf16.mxu0 0
        %640 = vmatpush1.bf16.msra.mxu0 %v631
        %641 = vmatprep.subr.bf16.mxu0 0
        %642 = vmatpush1.bf16.msra.mxu0 0
        %643 = vmatprep.subr.bf16.mxu0 0
        %644 = vmatpush1.bf16.msra.mxu0 0
        %645 = vmatprep.subr.bf16.mxu0 0
        %646 = vmatpush1.bf16.msra.mxu0 0
        %647 = vmatprep.subr.bf16.mxu0 0
        %648 = vmatpush1.bf16.msra.mxu0 0
        %649 = vmatprep.subr.bf16.mxu0 0
        %650 = vmatpush1.bf16.msra.mxu0 0
        %651 = vmatprep.subr.bf16.mxu0 0
        %652 = vmatpush1.bf16.msra.mxu0 0
        %653 = vmatprep.subr.bf16.mxu0 0
        %654 = vmatpush1.bf16.msra.mxu0 0
        %655 = vmatprep.subr.bf16.mxu0 0
        %656 = vmatpush1.bf16.msra.mxu0 0
        %657 = vmatprep.subr.bf16.mxu0 0
        %658 = vmatpush1.bf16.msra.mxu0 0
        %659 = vmatprep.subr.bf16.mxu0 0
        %660 = vmatpush1.bf16.msra.mxu0 0
        %661 = vmatprep.subr.bf16.mxu0 0
        %662 = vmatpush1.bf16.msra.mxu0 0
        %663 = vmatprep.subr.bf16.mxu0 0
        %664 = vmatpush1.bf16.msra.mxu0 0
        %665 = vmatprep.subr.bf16.mxu0 0
        %666 = vmatpush1.bf16.msra.mxu0 0
        %667 = vmatprep.subr.bf16.mxu0 0
        %668 = vmatpush1.bf16.msra.mxu0 0
        %669 = vmatprep.mubr.bf16.mxu0 0
        %670 = vmatmul.mubr.bf16.gmra.mrb[0].mxu0 %v635
        %v671 = vpop.f32.mrb[0].mxu0
        %v672 = vadd.f32 %v620, %v671
        %v673 = vpop.f32.mrb[0].mxu0
        %v674 = vpop.f32.mrb[0].mxu0
        %v675 = vpop.f32.mrb[0].mxu0
        %676 = vdwg.mxu0
        %v677 = vld [vmem:[%s518] sm:$0x1]
        %v679 = vlaneseq
        %v680 = vshrl.u32 %v679, 7
        %v681 = vsub.s32 0, %v680
        %v682 = vrot.slane %v677, %v681
        %v688 = vunpack.c.l.b16 %v547
        %v689 = vunpack.c.l.b16 %v548
        %v690 = vunpack.c.l.b16 %v549
        %v691 = vunpack.c.l.b16 %v550
        %v692 = vpack.c.b16 %v689, %v688
        %v693 = vpack.c.b16 %v691, %v690
        %696 = vmatprep.subr.bf16.mxu0 0
        %697 = vmatpush1.bf16.msra.mxu0 %v692
        %698 = vmatprep.subr.bf16.mxu0 0
        %699 = vmatpush1.bf16.msra.mxu0 %v693
        %700 = vmatprep.subr.bf16.mxu0 0
        %701 = vmatpush1.bf16.msra.mxu0 0
        %702 = vmatprep.subr.bf16.mxu0 0
        %703 = vmatpush1.bf16.msra.mxu0 0
        %704 = vmatprep.subr.bf16.mxu0 0
        %705 = vmatpush1.bf16.msra.mxu0 0
        %706 = vmatprep.subr.bf16.mxu0 0
        %707 = vmatpush1.bf16.msra.mxu0 0
        %708 = vmatprep.subr.bf16.mxu0 0
        %709 = vmatpush1.bf16.msra.mxu0 0
        %710 = vmatprep.subr.bf16.mxu0 0
        %711 = vmatpush1.bf16.msra.mxu0 0
        %712 = vmatprep.subr.bf16.mxu0 0
        %713 = vmatpush1.bf16.msra.mxu0 0
        %714 = vmatprep.subr.bf16.mxu0 0
        %715 = vmatpush1.bf16.msra.mxu0 0
        %716 = vmatprep.subr.bf16.mxu0 0
        %717 = vmatpush1.bf16.msra.mxu0 0
        %718 = vmatprep.subr.bf16.mxu0 0
        %719 = vmatpush1.bf16.msra.mxu0 0
        %720 = vmatprep.subr.bf16.mxu0 0
        %721 = vmatpush1.bf16.msra.mxu0 0
        %722 = vmatprep.subr.bf16.mxu0 0
        %723 = vmatpush1.bf16.msra.mxu0 0
        %724 = vmatprep.subr.bf16.mxu0 0
        %725 = vmatpush1.bf16.msra.mxu0 0
        %726 = vmatprep.subr.bf16.mxu0 0
        %727 = vmatpush1.bf16.msra.mxu0 0
        %728 = vmatprep.mubr.bf16.mxu0 0
        %729 = vmatmul.mubr.bf16.gmra.mrb[0].mxu0 %v635
        %v730 = vpop.f32.mrb[0].mxu0
        %v731 = vadd.f32 %v682, %v730
        %v732 = vpop.f32.mrb[0].mxu0
        %v733 = vpop.f32.mrb[0].mxu0
        %v734 = vpop.f32.mrb[0].mxu0
        %735 = vdwg.mxu0
        %v736 = vmul.f32 %v610, 0.35355338
        %v737 = vpack.c.bf16 %v736, %v736
        %v738 = vpack.c.bf16 %v672, %v672
        %vm739 = vcmask 64512
        %v741 = vsel %vm739, %v737, 0
        %v744 = vsel %vm739, %v738, 0
        %746 = vmatprep.subr.bf16.mxu0 0
        %747 = vmatpush1.bf16.xpose.msra.mxu0 %v744
        %748 = vmatprep.subr.bf16.mxu0 0
        %749 = vmatpush1.bf16.xpose.msra.mxu0 0
        %750 = vmatprep.subr.bf16.mxu0 0
        %751 = vmatpush1.bf16.xpose.msra.mxu0 0
        %752 = vmatprep.subr.bf16.mxu0 0
        %753 = vmatpush1.bf16.xpose.msra.mxu0 0
        %754 = vmatprep.subr.bf16.mxu0 0
        %755 = vmatpush1.bf16.xpose.msra.mxu0 0
        %756 = vmatprep.subr.bf16.mxu0 0
        %757 = vmatpush1.bf16.xpose.msra.mxu0 0
        %758 = vmatprep.subr.bf16.mxu0 0
        %759 = vmatpush1.bf16.xpose.msra.mxu0 0
        %760 = vmatprep.subr.bf16.mxu0 0
        %761 = vmatpush1.bf16.xpose.msra.mxu0 0
        %762 = vmatprep.subr.bf16.mxu0 0
        %763 = vmatpush1.bf16.xpose.msra.mxu0 0
        %764 = vmatprep.subr.bf16.mxu0 0
        %765 = vmatpush1.bf16.xpose.msra.mxu0 0
        %766 = vmatprep.subr.bf16.mxu0 0
        %767 = vmatpush1.bf16.xpose.msra.mxu0 0
        %768 = vmatprep.subr.bf16.mxu0 0
        %769 = vmatpush1.bf16.xpose.msra.mxu0 0
        %770 = vmatprep.subr.bf16.mxu0 0
        %771 = vmatpush1.bf16.xpose.msra.mxu0 0
        %772 = vmatprep.subr.bf16.mxu0 0
        %773 = vmatpush1.bf16.xpose.msra.mxu0 0
        %774 = vmatprep.subr.bf16.mxu0 0
        %775 = vmatpush1.bf16.xpose.msra.mxu0 0
        %776 = vmatprep.subr.bf16.mxu0 0
        %777 = vmatpush1.bf16.xpose.msra.mxu0 0
        %778 = vmatprep.mubr.bf16.mxu0 0
        %779 = vmatmul.mubr.bf16.gmra.mrb[0].mxu0 %v741
        %v780 = vpop.f32.mrb[0].mxu0
        %v781 = vadd.f32 0.0, %v780
        %v782 = vpop.f32.mrb[0].mxu0
        %v783 = vpop.f32.mrb[0].mxu0
        %v784 = vpop.f32.mrb[0].mxu0
        %785 = vdwg.mxu0
        %v786 = vsel %vm739, %v781, -inf
        %787 = vmax.xlane.f32.xlu0 %v786
        %v788 = vpop.xlane.xlu0 %787
        %v789 = vsub.f32 %v781, %v788
        %v790 = vmul.f32 %v789, 1.442695
        %v791 = vpow.pop %v790
        %v792 = vsel %vm739, %v791, 0.0
        %793 = vadd.xlane.f32.xlu0 %v792
        %v794 = vpop.xlane.xlu0 %793
        %v795 = vpack.c.bf16 %v791, %v791
        %v796 = vpack.c.bf16 %v731, %v731
        %v798 = vsel %vm739, %v795, 0
        %vm800 = vcmask 1043456
        %v802 = vsel %vm800, %v796, 0
        %804 = vmatprep.subr.bf16.mxu0 0
        %805 = vmatpush1.bf16.msra.mxu0 %v802
        %806 = vmatprep.subr.bf16.mxu0 0
        %807 = vmatpush1.bf16.msra.mxu0 0
        %808 = vmatprep.subr.bf16.mxu0 0
        %809 = vmatpush1.bf16.msra.mxu0 0
        %810 = vmatprep.subr.bf16.mxu0 0
        %811 = vmatpush1.bf16.msra.mxu0 0
        %812 = vmatprep.subr.bf16.mxu0 0
        %813 = vmatpush1.bf16.msra.mxu0 0
        %814 = vmatprep.subr.bf16.mxu0 0
        %815 = vmatpush1.bf16.msra.mxu0 0
        %816 = vmatprep.subr.bf16.mxu0 0
        %817 = vmatpush1.bf16.msra.mxu0 0
        %818 = vmatprep.subr.bf16.mxu0 0
        %819 = vmatpush1.bf16.msra.mxu0 0
        %820 = vmatprep.subr.bf16.mxu0 0
        %821 = vmatpush1.bf16.msra.mxu0 0
        %822 = vmatprep.subr.bf16.mxu0 0
        %823 = vmatpush1.bf16.msra.mxu0 0
        %824 = vmatprep.subr.bf16.mxu0 0
        %825 = vmatpush1.bf16.msra.mxu0 0
        %826 = vmatprep.subr.bf16.mxu0 0
        %827 = vmatpush1.bf16.msra.mxu0 0
        %828 = vmatprep.subr.bf16.mxu0 0
        %829 = vmatpush1.bf16.msra.mxu0 0
        %830 = vmatprep.subr.bf16.mxu0 0
        %831 = vmatpush1.bf16.msra.mxu0 0
        %832 = vmatprep.subr.bf16.mxu0 0
        %833 = vmatpush1.bf16.msra.mxu0 0
        %834 = vmatprep.subr.bf16.mxu0 0
        %835 = vmatpush1.bf16.msra.mxu0 0
        %836 = vmatprep.mubr.bf16.mxu0 0
        %837 = vmatmul.mubr.bf16.gmra.mrb[0].mxu0 %v798
        %v838 = vpop.f32.mrb[0].mxu0
        %v839 = vadd.f32 0.0, %v838
        %v840 = vpop.f32.mrb[0].mxu0
        %v841 = vpop.f32.mrb[0].mxu0
        %v842 = vpop.f32.mrb[0].mxu0
        %843 = vdwg.mxu0
        %v844 = vrcp.pop %v794
        %v845 = vmul.f32 %v839, %v844
        %v846 = vld [vmem:[#allocation2] sm:$0xff]
        %v847 = vpack.c.bf16 %v845, %v845
        %v849 = vsel %vm739, %v847, 0
        %v852 = vsel %vm800, %v551, 0
        %854 = vmatprep.subr.bf16.mxu0 0
        %855 = vmatpush1.bf16.msra.mxu0 %v852
        %856 = vmatprep.subr.bf16.mxu0 0
        %857 = vmatpush1.bf16.msra.mxu0 0
        %858 = vmatprep.subr.bf16.mxu0 0
        %859 = vmatpush1.bf16.msra.mxu0 0
        %860 = vmatprep.subr.bf16.mxu0 0
        %861 = vmatpush1.bf16.msra.mxu0 0
        %862 = vmatprep.subr.bf16.mxu0 0
        %863 = vmatpush1.bf16.msra.mxu0 0
        %864 = vmatprep.subr.bf16.mxu0 0
        %865 = vmatpush1.bf16.msra.mxu0 0
        %866 = vmatprep.subr.bf16.mxu0 0
        %867 = vmatpush1.bf16.msra.mxu0 0
        %868 = vmatprep.subr.bf16.mxu0 0
        %869 = vmatpush1.bf16.msra.mxu0 0
        %870 = vmatprep.subr.bf16.mxu0 0
        %871 = vmatpush1.bf16.msra.mxu0 0
        %872 = vmatprep.subr.bf16.mxu0 0
        %873 = vmatpush1.bf16.msra.mxu0 0
        %874 = vmatprep.subr.bf16.mxu0 0
        %875 = vmatpush1.bf16.msra.mxu0 0
        %876 = vmatprep.subr.bf16.mxu0 0
        %877 = vmatpush1.bf16.msra.mxu0 0
        %878 = vmatprep.subr.bf16.mxu0 0
        %879 = vmatpush1.bf16.msra.mxu0 0
        %880 = vmatprep.subr.bf16.mxu0 0
        %881 = vmatpush1.bf16.msra.mxu0 0
        %882 = vmatprep.subr.bf16.mxu0 0
        %883 = vmatpush1.bf16.msra.mxu0 0
        %884 = vmatprep.subr.bf16.mxu0 0
        %885 = vmatpush1.bf16.msra.mxu0 0
        %886 = vmatprep.mubr.bf16.mxu0 0
        %887 = vmatmul.mubr.bf16.gmra.mrb[0].mxu0 %v849
        %v888 = vpop.f32.mrb[0].mxu0
        %v889 = vadd.f32 0.0, %v888
        %v890 = vpop.f32.mrb[0].mxu0
        %v891 = vpop.f32.mrb[0].mxu0
        %v892 = vpop.f32.mrb[0].mxu0
        %893 = vdwg.mxu0
        %v894 = vadd.f32 %v846, %v889
        %895 = vst.msk [vmem:[#allocation2] sm:$0xff] %vm571, %v894
        %p896 = scmp.eq.s32.totalorder %s31, 3
        // Predicated region
        $region65: #{tpu_custom_call.1} parent=59 // pred_check
          %p897 = pneg %p896
        $region66: #{tpu_custom_call.1} parent=59 // pred_check_branch
          %899 = sbr.rel (%p897) target = $region68
        $region67: #{tpu_custom_call.1} parent=59 // pred_region
          %v900 = vld [vmem:[#allocation2] sm:$0xff]
          %901 = vst.msk [vmem:[%s483] sm:$0xff] %vm571, %v900
        $region68: #{tpu_custom_call.1} parent=59 // pred_fallthru
          _
        %s902 = sand.u32 %s310, 1
        %s903 = scalar_lea.sflag [#allocation4], %s902
        %s904 = sand.u32 %s310, 1
        %s905 = smul.addr %s904, 8
        %s906 = scalar_lea.vmem [#allocation3], %s905
        // Predicated region
        $region69: #{tpu_custom_call.1} parent=59 // pred_check
          %p907 = pneg %p320
        $region70: #{tpu_custom_call.1} parent=59 // pred_check_branch
          %909 = sbr.rel (%p907) target = $region72
        $region71: #{tpu_custom_call.1} parent=59 // pred_region
          %s911 = ssub.s32 128, 128
          %912 = vsyncadd %s903, %s911
          %s913 = sadd.s32 %s30, %s29
          %s914 = smul.addr %s913, 128
          %s915 = scalar_lea.hbm %s10, %s914
          %s917 = sshll.u32 %s906, 4
          %s918 = int_to_ptr.vmem [resolvable:$true] %s917
          %920 = dma.vmem_to_hbm [thread:$0]  %s918, 128, %s915, %s903
        $region72: #{tpu_custom_call.1} parent=59 // pred_fallthru
          _
      $region60: #{tpu_custom_call.1} parent=5 // pred_fallthru
        _
      %p921 = scmp.le.s32.totalorder 2, %s19
      // Predicated region
      $region73: #{tpu_custom_call.1} parent=5 // pred_check
        %p922 = pneg %p921
      $region74: #{tpu_custom_call.1} parent=5 // pred_check_branch
        %924 = sbr.rel (%p922) target = $region76
      $region75: #{tpu_custom_call.1} parent=5 // pred_region
        %s925 = ssub.s32 %s19, 2
        // Predicated region
        $region77: #{tpu_custom_call.1} parent=75 // pred_check
          %p926 = pneg %p326
        $region78: #{tpu_custom_call.1} parent=75 // pred_check_branch
          %928 = sbr.rel (%p926) target = $region80
        $region79: #{tpu_custom_call.1} parent=75 // pred_region
          %s929 = sand.u32 %s311, 1
          %s930 = scalar_lea.sflag [#allocation4], %s929
          %s931 = sand.u32 %s311, 1
          %s932 = smul.addr %s931, 8
          %s933 = scalar_lea.vmem [#allocation3], %s932
          %934 = dma.done %s930, 128
        $region80: #{tpu_custom_call.1} parent=75 // pred_fallthru
          _
      $region76: #{tpu_custom_call.1} parent=5 // pred_fallthru
        _
    $region6: #{tpu_custom_call.1} parent=1 // loop_footer
      %s23 = sadd.s32 1, %s19
    $region7: #{tpu_custom_call.1} parent=1 // loop_footer_branch
      %18 = sbr.rel target = $region3
    $region8: #{tpu_custom_call.1} parent=1 // loop_exit
      _
    %935 = vsyncpa [#allocation4], 1
    %s936 = scalar_lea.sflag [#allocation4], 1
    %937 = vsyncpa %s936, 1

</llo_original>
